<compile_context>
chip_gen: v7x
topology: tpu7x:2x2x1
jax: 0.10.0
libtpu: 0.0.40
codegen_flags: <defaults>
</compile_context>

<pallas_src>
import numpy as np
import jax
import jax.numpy as jnp
from jax import lax
from jax.experimental import pallas as pl
from jax.experimental.pallas import tpu as pltpu

_VMEM_LIMIT_BYTES = 64 * 1024 * 1024   # explicit VMEM budget (usage here is far below this)


# ----------------------------------------------------------------------------
# tanh-approximate GELU: transcendental runs on the EUP slot (otherwise idle), instead of
# a long dependent VALU polynomial on the widest tensor of the block.
# ----------------------------------------------------------------------------
_SQRT_2_OVER_PI = 0.7978845608028654


def _gelu_tanh(x):
    return 0.5 * x * (1.0 + jnp.tanh(_SQRT_2_OVER_PI * (x + 0.044715 * x * x * x)))


# ----------------------------------------------------------------------------
# Kernel 1: embedding lookup as a DMA row-gather from HBM + positional embedding add.
#   ids_ref : (B, NT) int32, scalar-prefetched into SMEM
#   pos_ref : (NT, D) f32, same block for every batch step (DMA'd once)
#   table   : (V, D) f32, stays in HBM (memory_space=pl.ANY); rows gathered by DMA
# ----------------------------------------------------------------------------
def _embed_kernel(ids_ref, pos_ref, table_hbm, out_ref, buf, sems):
    b = pl.program_id(0)
    nt = buf.shape[0]
    v_max = table_hbm.shape[0] - 1

    @pl.loop(0, nt)
    def _issue(t):
        row = jnp.minimum(jnp.maximum(ids_ref[b, t], 0), v_max)
        pltpu.make_async_copy(table_hbm.at[row], buf.at[t], sems.at[t]).start()

    @pl.loop(0, nt)
    def _wait(t):
        pltpu.make_async_copy(table_hbm.at[0], buf.at[t], sems.at[t]).wait()

    out_ref[...] = buf[...] + pos_ref[...]


def embed_lookup(ids, table, pos):
    B, NT = ids.shape
    V, D = table.shape
    return pl.pallas_call(
        _embed_kernel,
        out_shape=jax.ShapeDtypeStruct((B, NT, D), jnp.float32),
        grid_spec=pltpu.PrefetchScalarGridSpec(
            num_scalar_prefetch=1,
            grid=(B,),
            in_specs=[
                pl.BlockSpec((NT, D), lambda b, ids_ref: (0, 0)),   # pos: same block every step
                pl.BlockSpec(memory_space=pl.ANY),                  # table stays in HBM
            ],
            out_specs=pl.BlockSpec((None, NT, D), lambda b, ids_ref: (b, 0, 0)),
            scratch_shapes=[pltpu.VMEM((NT, D), jnp.float32),
                            pltpu.SemaphoreType.DMA((NT,))],
        ),
        compiler_params=pltpu.CompilerParams(
            dimension_semantics=("parallel",),
            vmem_limit_bytes=_VMEM_LIMIT_BYTES),
    )(ids.astype(jnp.int32), pos, table)


# ----------------------------------------------------------------------------
# Kernel 2: fused ConvNeXtV2 block (depthwise conv7 + LayerNorm + Linear + GELU + GRN +
#           Linear + residual), one batch element per grid step.
# ----------------------------------------------------------------------------
def _convnext_kernel(xp_ref, dww_ref, dwb_ref, lng_ref, lnb_ref,
                     w1_ref, b1_ref, gg_ref, gb_ref, w2_ref, b2_ref, out_ref):
    # xp_ref: (N+6, D) sequence zero-padded by 3 on each side; out_ref: (N, D)
    n, d = out_ref.shape

    # depthwise Conv1d(D, D, kernel_size=7, padding=3, groups=D)
    # taps are ref-sliced loads -> no in-register sublane shuffles of the big (N+6, D) tile
    y = xp_ref[pl.ds(0, n), :] * dww_ref[pl.ds(0, 1), :]
    for k in range(1, 7):
        y = y + xp_ref[pl.ds(k, n), :] * dww_ref[pl.ds(k, 1), :]
    y = y + dwb_ref[...]

    # LayerNorm over channels, eps=1e-6
    mu = jnp.mean(y, axis=-1, keepdims=True)
    yc = y - mu
    var = jnp.mean(yc * yc, axis=-1, keepdims=True)
    y = yc * lax.rsqrt(var + 1e-6)
    y = y * lng_ref[...] + lnb_ref[...]

    # pwconv1 (bf16 MXU operands, f32 accumulate) + tanh-GELU (EUP)
    h = jnp.dot(y.astype(jnp.bfloat16), w1_ref[...],
                preferred_element_type=jnp.float32) + b1_ref[...]
    h = _gelu_tanh(h)

    # GRN: L2 norm over the sequence axis, normalized over channels
    gx = jnp.sqrt(jnp.sum(h * h, axis=0, keepdims=True))        # (1, DI)
    nx = gx / (jnp.mean(gx, axis=-1, keepdims=True) + 1e-6)     # (1, DI)
    h = gg_ref[...] * (h * nx) + gb_ref[...] + h

    # pwconv2 (bf16 MXU) + residual (residual read straight from the ref)
    o = jnp.dot(h.astype(jnp.bfloat16), w2_ref[...],
                preferred_element_type=jnp.float32) + b2_ref[...]
    out_ref[...] = xp_ref[pl.ds(3, n), :] + o


def convnext_block(x, p):
    B, N, D = x.shape
    xp = jnp.pad(x, ((0, 0), (3, 3), (0, 0)))        # glue: zero padding for the k=7 conv
    w1 = p['w1'].astype(jnp.bfloat16)                # MXU-native dtype, halves weight DMA/VMEM
    w2 = p['w2'].astype(jnp.bfloat16)

    def const2d(arr):                                # grid-invariant block -> DMA'd once
        return pl.BlockSpec(arr.shape, lambda i: (0, 0))

    return pl.pallas_call(
        _convnext_kernel,
        out_shape=jax.ShapeDtypeStruct((B, N, D), jnp.float32),
        grid=(B,),
        in_specs=[pl.BlockSpec((None, N + 6, D), lambda i: (i, 0, 0)),
                  const2d(p['dw_w']), const2d(p['dw_b']),
                  const2d(p['ln_g']), const2d(p['ln_b']),
                  const2d(w1), const2d(p['b1']),
                  const2d(p['grn_g']), const2d(p['grn_b']),
                  const2d(w2), const2d(p['b2'])],
        out_specs=pl.BlockSpec((None, N, D), lambda i: (i, 0, 0)),
        compiler_params=pltpu.CompilerParams(
            dimension_semantics=("parallel",),
            vmem_limit_bytes=_VMEM_LIMIT_BYTES),
    )(xp, p['dw_w'], p['dw_b'], p['ln_g'], p['ln_b'],
      w1, p['b1'], p['grn_g'], p['grn_b'], w2, p['b2'])


# ----------------------------------------------------------------------------
# Kernel 3: strided Conv1d(D, D, kernel=4, stride=2, padding=1) with in-kernel im2col:
#           each of the 4 taps is a stride-2 sublane read accumulated through a (D, D)
#           bf16 GEMM. No duplicated (B, n_out, 4D) cols array in HBM.
# ----------------------------------------------------------------------------
def _downsample_kernel(xp_ref, w_ref, b_ref, out_ref):
    # xp_ref: (N_in + 2, D); w_ref: (4, D, D) bf16 with w_ref[k, ci, co] == torch_w[co, ci, k]
    n_out, d = out_ref.shape
    acc = jnp.zeros((n_out, d), jnp.float32)
    for k in range(4):
        xk = xp_ref[pl.ds(k, n_out, stride=2), :].astype(jnp.bfloat16)
        acc = acc + jnp.dot(xk, w_ref[k], preferred_element_type=jnp.float32)
    out_ref[...] = acc + b_ref[...]


def downsample_conv(x, w, b):
    # x: (B, N, D) channel-last; w: torch layout (out_ch, in_ch, 4); b: (D,)
    B, N, D = x.shape
    K = 4
    n_out = (N + 2 - K) // 2 + 1
    xp = jnp.pad(x, ((0, 0), (1, 1), (0, 0)))                    # glue: padding=1
    w_taps = jnp.transpose(w, (2, 1, 0)).astype(jnp.bfloat16)    # (K, D_in, D_out)
    b2d = b.reshape(1, D)
    return pl.pallas_call(
        _downsample_kernel,
        out_shape=jax.ShapeDtypeStruct((B, n_out, D), jnp.float32),
        grid=(B,),
        in_specs=[pl.BlockSpec((None, N + 2, D), lambda i: (i, 0, 0)),
                  pl.BlockSpec((K, D, D), lambda i: (0, 0, 0)),
                  pl.BlockSpec((1, D), lambda i: (0, 0))],
        out_specs=pl.BlockSpec((None, n_out, D), lambda i: (i, 0, 0)),
        compiler_params=pltpu.CompilerParams(
            dimension_semantics=("parallel",),
            vmem_limit_bytes=_VMEM_LIMIT_BYTES),
    )(xp, w_taps, b2d)


# ----------------------------------------------------------------------------
# Module glue: freqs_cis, pos indices, parameter init, full forward
# ----------------------------------------------------------------------------
def precompute_freqs_cis(dim, end, theta=10000.0):
    freqs = 1.0 / (theta ** (jnp.arange(0, dim, 2)[: dim // 2].astype(jnp.float32) / dim))
    t = jnp.arange(end, dtype=jnp.float32)
    f = jnp.outer(t, freqs)
    return jnp.concatenate([jnp.cos(f), jnp.sin(f)], axis=-1)          # (end, dim)


def init_params(key, text_num_embeds, text_dim, max_pos, conv_layers=2, conv_mult=2):
    D, DI = text_dim, text_dim * conv_mult
    kit = iter(jax.random.split(key, 64))
    nk = lambda: next(kit)
    params = {
        'embed': 0.02 * jax.random.normal(nk(), (text_num_embeds + 1, D), jnp.float32),
        'freqs_cis': precompute_freqs_cis(D, 4 * max_pos),
        'conv_blocks': [],
        'downsample': [],
    }
    for _ in range(conv_layers):
        params['conv_blocks'].append({
            'dw_w': 0.1 * jax.random.normal(nk(), (7, D), jnp.float32),   # torch (D,1,7) transposed
            'dw_b': 0.01 * jax.random.normal(nk(), (1, D), jnp.float32),
            'ln_g': jnp.ones((1, D), jnp.float32),
            'ln_b': jnp.zeros((1, D), jnp.float32),
            'w1': 0.05 * jax.random.normal(nk(), (D, DI), jnp.float32),   # torch Linear weight.T
            'b1': 0.01 * jax.random.normal(nk(), (1, DI), jnp.float32),
            'grn_g': 0.01 * jax.random.normal(nk(), (1, DI), jnp.float32),
            'grn_b': 0.01 * jax.random.normal(nk(), (1, DI), jnp.float32),
            'w2': 0.05 * jax.random.normal(nk(), (DI, D), jnp.float32),
            'b2': 0.01 * jax.random.normal(nk(), (1, D), jnp.float32),
        })
    for _ in range(2):
        params['downsample'].append({
            'w': 0.05 * jax.random.normal(nk(), (D, D, 4), jnp.float32),  # torch (out, in, k)
            'b': 0.01 * jax.random.normal(nk(), (D,), jnp.float32),
        })
    return params


def text_embedding_forward(params, text_ids, seq_len, drop_text=False):
    B, NT = text_ids.shape
    D = params['embed'].shape[1]
    if drop_text:
        text_ids = jnp.zeros_like(text_ids)

    # get_pos_embed_indices with batch_start = 0 (identical for every batch row); the
    # (NT, D) pos table is passed once and the same VMEM block is re-used per batch step.
    assert NT == 4 * seq_len, "text length must equal 4 * seq_len for the pos-embed add"
    max_idx = params['freqs_cis'].shape[0] - 1
    pos_idx = jnp.minimum(jnp.arange(NT), max_idx)
    pos = params['freqs_cis'][pos_idx]                    # (NT, D)  -- glue gather

    x = embed_lookup(text_ids, params['embed'], pos)      # (B, NT, D)

    for blk in params['conv_blocks']:
        x = convnext_block(x, blk)
    for ds in params['downsample']:
        x = downsample_conv(x, ds['w'], ds['b'])
    return x                                              # (B, seq_len, D)


if __name__ == "__main__":
    B, SEQ_LEN = 2, 8
    TEXT_NUM_EMBEDS, TEXT_DIM, MAX_POS = 16, 128, 64      # text_dim lane-dense (x128)
    NT = 4 * SEQ_LEN                                      # text length = 4 * seq_len

    key = jax.random.PRNGKey(0)
    pkey, ikey = jax.random.split(key)
    params = init_params(pkey, TEXT_NUM_EMBEDS, TEXT_DIM, MAX_POS, conv_layers=2, conv_mult=2)
    text = jax.random.randint(ikey, (B, NT), 0, TEXT_NUM_EMBEDS + 1, dtype=jnp.int32)

    out = text_embedding_forward(params, text, SEQ_LEN, drop_text=False)
    out = jax.block_until_ready(out)
    assert out.shape == (B, SEQ_LEN, TEXT_DIM), out.shape
    assert bool(jnp.all(jnp.isfinite(out)))
    print("KERNEL_OK")
</pallas_src>

<mosaic_0001>
module attributes {stable_mosaic.version = 11 : i64} {
  func.func @_embed_kernel(%arg0: i32, %arg1: memref<2x32xi32, #tpu.memory_space<smem>>, %arg2: memref<32x128xf32, #tpu.memory_space<vmem>>, %arg3: memref<17x128xf32, #tpu.memory_space<any>>, %arg4: memref<1x32x128xf32, #tpu.memory_space<vmem>>, %arg5: memref<32x128xf32, #tpu.memory_space<vmem>>, %arg6: memref<32x!tpu.dma_semaphore, #tpu.memory_space<semaphore_mem>>) attributes {dimension_semantics = [#tpu.dimension_semantics<parallel>], iteration_bounds = array<i64: 2>, scalar_prefetch = 1 : i64, scratch_operands = 2 : i64, tpu.core_type = #tpu.core_type<tc>, window_params = [{pipeline_mode = #tpu.pipeline_mode<synchronous>, transform_indices = @transform_0, window_bounds = array<i64: 32, 128>}, {}, {transform_indices = @transform_2, window_bounds = array<i64: 1, 32, 128>}]} {
    %c0_i32 = arith.constant 0 : i32
    %c32_i32 = arith.constant 32 : i32
    %0 = arith.addi %c0_i32, %c32_i32 : i32
    %c1_i32 = arith.constant 1 : i32
    scf.for %arg7 = %c0_i32 to %0 step %c1_i32  : i32 {
      %c1_i32_11 = arith.constant 1 : i32
      %8 = arith.muli %arg7, %c1_i32_11 : i32
      %c0_i32_12 = arith.constant 0 : i32
      %9 = arith.addi %c0_i32_12, %8 : i32
      %10 = arith.index_cast %arg0 : i32 to index
      %11 = arith.index_cast %9 : i32 to index
      %12 = memref.load %arg1[%10, %11] : memref<2x32xi32, #tpu.memory_space<smem>>
      %c0_i32_13 = arith.constant 0 : i32
      %13 = arith.maxsi %12, %c0_i32_13 : i32
      %c16_i32 = arith.constant 16 : i32
      %14 = arith.minsi %13, %c16_i32 : i32
      %c0_i32_14 = arith.constant 0 : i32
      %15 = tpu.memref_slice %arg3[%14, %c0_i32_14] : memref<17x128xf32, #tpu.memory_space<any>> -> memref<1x128xf32, #tpu.memory_space<any>>
      %16 = tpu.memref_squeeze %15 : memref<1x128xf32, #tpu.memory_space<any>> -> memref<128xf32, #tpu.memory_space<any>>
      %c0_i32_15 = arith.constant 0 : i32
      %17 = tpu.memref_slice %arg5[%9, %c0_i32_15] : memref<32x128xf32, #tpu.memory_space<vmem>> -> memref<1x128xf32, #tpu.memory_space<vmem>>
      %18 = tpu.memref_squeeze %17 : memref<1x128xf32, #tpu.memory_space<vmem>> -> memref<128xf32, #tpu.memory_space<vmem>>
      %19 = tpu.memref_slice %arg6[%9] : memref<32x!tpu.dma_semaphore, #tpu.memory_space<semaphore_mem>> -> memref<1x!tpu.dma_semaphore, #tpu.memory_space<semaphore_mem>>
      %20 = tpu.memref_squeeze %19 : memref<1x!tpu.dma_semaphore, #tpu.memory_space<semaphore_mem>> -> memref<!tpu.dma_semaphore, #tpu.memory_space<semaphore_mem>>
      tpu.enqueue_dma source(%16 : memref<128xf32, #tpu.memory_space<any>>) target(%18 : memref<128xf32, #tpu.memory_space<vmem>>) target_semaphore(%20 : memref<!tpu.dma_semaphore, #tpu.memory_space<semaphore_mem>>)
    }
    %c32_i32_0 = arith.constant 32 : i32
    %c0_i32_1 = arith.constant 0 : i32
    %c32_i32_2 = arith.constant 32 : i32
    %1 = arith.addi %c0_i32_1, %c32_i32_2 : i32
    %c1_i32_3 = arith.constant 1 : i32
    scf.for %arg7 = %c0_i32_1 to %1 step %c1_i32_3  : i32 {
      %c1_i32_11 = arith.constant 1 : i32
      %8 = arith.muli %arg7, %c1_i32_11 : i32
      %c0_i32_12 = arith.constant 0 : i32
      %9 = arith.addi %c0_i32_12, %8 : i32
      %c0_i32_13 = arith.constant 0 : i32
      %c0_i32_14 = arith.constant 0 : i32
      %10 = tpu.memref_slice %arg3[%c0_i32_13, %c0_i32_14] : memref<17x128xf32, #tpu.memory_space<any>> -> memref<1x128xf32, #tpu.memory_space<any>>
      %11 = tpu.memref_squeeze %10 : memref<1x128xf32, #tpu.memory_space<any>> -> memref<128xf32, #tpu.memory_space<any>>
      %c0_i32_15 = arith.constant 0 : i32
      %12 = tpu.memref_slice %arg5[%9, %c0_i32_15] : memref<32x128xf32, #tpu.memory_space<vmem>> -> memref<1x128xf32, #tpu.memory_space<vmem>>
      %13 = tpu.memref_squeeze %12 : memref<1x128xf32, #tpu.memory_space<vmem>> -> memref<128xf32, #tpu.memory_space<vmem>>
      %14 = tpu.memref_slice %arg6[%9] : memref<32x!tpu.dma_semaphore, #tpu.memory_space<semaphore_mem>> -> memref<1x!tpu.dma_semaphore, #tpu.memory_space<semaphore_mem>>
      %15 = tpu.memref_squeeze %14 : memref<1x!tpu.dma_semaphore, #tpu.memory_space<semaphore_mem>> -> memref<!tpu.dma_semaphore, #tpu.memory_space<semaphore_mem>>
      tpu.wait_dma2 semaphore(%15 : memref<!tpu.dma_semaphore, #tpu.memory_space<semaphore_mem>>) src(%11 : memref<128xf32, #tpu.memory_space<any>>) dst(%13 : memref<128xf32, #tpu.memory_space<vmem>>)
    }
    %c32_i32_4 = arith.constant 32 : i32
    %c0 = arith.constant 0 : index
    %c0_5 = arith.constant 0 : index
    %2 = vector.load %arg5[%c0, %c0_5] : memref<32x128xf32, #tpu.memory_space<vmem>>, vector<32x128xf32>
    %c0_6 = arith.constant 0 : index
    %c0_7 = arith.constant 0 : index
    %3 = vector.load %arg2[%c0_6, %c0_7] : memref<32x128xf32, #tpu.memory_space<vmem>>, vector<32x128xf32>
    %4 = arith.addf %2, %3 : vector<32x128xf32>
    %c0_8 = arith.constant 0 : index
    %c0_9 = arith.constant 0 : index
    %c0_10 = arith.constant 0 : index
    %5 = vector.load %arg4[%c0_8, %c0_9, %c0_10] : memref<1x32x128xf32, #tpu.memory_space<vmem>>, vector<1x32x128xf32>
    %6 = vector.shape_cast %5 : vector<1x32x128xf32> to vector<32x128xf32>
    %7 = vector.shape_cast %4 : vector<32x128xf32> to vector<1x32x128xf32>
    tpu.vector_store %arg4[%c0_8, %c0_9, %c0_10], %7 {strides = array<i32>} : memref<1x32x128xf32, #tpu.memory_space<vmem>>, vector<1x32x128xf32>,
    return
  }
  func.func @transform_0(%arg0: i32, %arg1: memref<2x32xi32, #tpu.memory_space<smem>>) -> (i32, i32) {
    %c0_i32 = arith.constant 0 : i32
    %c0_i32_0 = arith.constant 0 : i32
    %c0_i32_1 = arith.constant 0 : i32
    return %c0_i32, %c0_i32_0 : i32, i32
  }
  func.func @transform_2(%arg0: i32, %arg1: memref<2x32xi32, #tpu.memory_space<smem>>) -> (i32, i32, i32) {
    %c0_i32 = arith.constant 0 : i32
    %c0_i32_0 = arith.constant 0 : i32
    %c0_i32_1 = arith.constant 0 : i32
    return %arg0, %c0_i32, %c0_i32_0 : i32, i32, i32
  }
}

</mosaic_0001>

<llo_original>
// kernel: tpu_custom_call.1
$region0: #{tpu_custom_call.1}
  #allocation0 [shape = 'u32[]', space=smem, size = 0x4, offset = 0x4, fixed_abs, tag = 'smem constant byte address 0x4 - core index']
  #allocation1 [shape = 'u32[144,128]{1,0:T(1,128)}', space=vmem, size = 0x12000, scoped, tag = 'internal scratch']
  #allocation2 [shape = 'f32[32,128]{1,0:T(8,128)}', space=vmem, size = 0x4000, scoped, tag = 'scratch operand']
  #allocation3 [shape = 's32[32]{0}', space=sflag, size = 0x80, scoped, tag = 'scratch operand']
  #allocation4 [shape = 's32[1]{0}', space=sflag, size = 0x4, scoped, tag = 'scoped memory for tpu_custom_call.1']
  #allocation5 [shape = 'u8[1024]{0}', space=smem, size = 0x400, scoped, tag = 'prefetched SMEM operand 0']
  #allocation10 [shape = 's32[]', space=sflag, size = 0x4, offset = 0, fixed_abs, tag = 'sflag constant byte address 0x0 - dummy sync flag']
  #allocation11 [shape = 's32[]', space=sflag, size = 0x4, offset = 0, fixed_abs, tag = 'sflag constant byte address 0x0 - dummy sync flag']
  #allocation12 [shape = 'u32[]', space=smem, size = 0x4, offset = 0x44, fixed_abs, tag = 'smem constant byte address 0x44 - assertion arg 0']
  #allocation13 [shape = 'u32[]', space=smem, size = 0x4, offset = 0x48, fixed_abs, tag = 'smem constant byte address 0x48 - assertion arg 1']
  %s0 = inlined_call_operand.hbm [shape: s32[2,32], index: 0, kind: input, shape index: {}]
  %s1 = inlined_call_operand.hbm [shape: f32[32,128], index: 1, kind: input, shape index: {}]
  %s2 = inlined_call_operand.hbm [shape: f32[17,128], index: 2, kind: input, shape index: {}]
  %s3 = inlined_call_operand.hbm [shape: f32[2,32,128], index: 3, kind: output, shape index: {}]
  %s4 = sld [smem:[#allocation0]]
  $region59: #{tpu_custom_call.1} parent=0
    _
  %s6 = ssub.s32 1, %s4
  %s7 = scalar_select 0, %s6, %s4
  %9 = dma.hbm_to_smem %s0, 32, [#allocation5], [#allocation4]
  %10 = dma.done [#allocation4], 32
  %11 = sfence
  $region1: #{tpu_custom_call.1} parent=0
    #allocation6 [shape = 'u8[16384]{0}', space=vmem, size = 0x4000, scoped, tag = 'input window, operand 1, single buffered']
    #allocation7 [shape = 's32[2]{0}', space=sflag, size = 0x8, scoped, tag = 'scoped memory for tpu_custom_call.1']
    #allocation8 [shape = 's32[2]{0}', space=sflag, size = 0x8, scoped, tag = 'scoped memory for tpu_custom_call.1']
    #allocation9 [shape = 'u8[32768]{0}', space=vmem, size = 0x8000, scoped, tag = 'output window, operand 0']
    %12 = vsyncpa [#allocation7], 0
    %13 = vsyncpa [#allocation8], 0
    %s14 = scalar_lea.sflag [#allocation8], 1
    %15 = vsyncpa %s14, 0
    loop: start=0, step=1, limit=4
    $region2: #{tpu_custom_call.1} parent=1 // loop_pre_header
      _
    $region3: #{tpu_custom_call.1} parent=1 // loop_header
      %s17 = sphi 0, %s21
      %p18 = scmp.ge.s32.totalorder %s17, 4
      %s25 = sphi 0, %s25
      %s27 = sphi 0, %s25
      %s28 = sphi 0, %s27
      %s42 = sphi 0, %s28
      %s48 = sphi 0, %s50
      %s51 = sphi 0, %s48
      %s52 = sphi 0, %s51
      %s68 = sphi 0, %s52
    $region4: #{tpu_custom_call.1} parent=1 // loop_header_branch
      %20 = sbr.rel (%p18) target = $region8
    $region5: #{tpu_custom_call.1} parent=1 // loop_body
      %s22 = ssub.s32 %s17, 1
      %s23 = ssub.s32 %s17, 2
      %s24 = sadd.s32 %s17, 1
      %s26 = sadd.s32 %s25, 1
      %p29 = scmp.eq.s32.totalorder %s17, 1
      %p30 = scmp.ne.s32.totalorder %s25, %s27
      %p31 = scmp.eq.s32.totalorder %s17, 0
      %p32 = por %p30, %p31
      %p33 = scmp.ne.s32.totalorder %s25, %s27
      %p34 = scmp.eq.s32.totalorder %s22, 1
      %p35 = por %p33, %p34
      %p36 = scmp.ne.s32.totalorder %s27, %s28
      %p37 = scmp.eq.s32.totalorder %s22, 0
      %p38 = por %p36, %p37
      %p39 = scmp.ne.s32.totalorder %s27, %s28
      %p40 = scmp.eq.s32.totalorder %s23, 1
      %p41 = por %p39, %p40
      %p43 = scmp.ne.s32.totalorder %s28, %s42
      %p44 = scmp.eq.s32.totalorder %s23, 0
      %p45 = por %p43, %p44
      %s46 = ssub.s32 %s17, %s24
      %p47 = scmp.eq.s32.totalorder %s46, 0
      %s49 = sadd.s32 %s48, 1
      %s50 = scalar_select %p47, %s48, %s49
      %p53 = pneg %p47
      %p54 = scmp.eq.s32.totalorder %s17, 1
      %p55 = por %p53, %p54
      %p56 = scmp.ne.s32.totalorder %s48, %s51
      %p57 = scmp.eq.s32.totalorder %s17, 0
      %p58 = por %p56, %p57
      %p59 = scmp.ne.s32.totalorder %s48, %s51
      %p60 = scmp.eq.s32.totalorder %s22, 1
      %p61 = por %p59, %p60
      %p62 = scmp.ne.s32.totalorder %s51, %s52
      %p63 = scmp.eq.s32.totalorder %s22, 0
      %p64 = por %p62, %p63
      %p65 = scmp.ne.s32.totalorder %s51, %s52
      %p66 = scmp.eq.s32.totalorder %s23, 1
      %p67 = por %p65, %p66
      %p69 = scmp.ne.s32.totalorder %s52, %s68
      %p70 = scmp.eq.s32.totalorder %s23, 0
      %p71 = por %p69, %p70
      %p72 = scmp.le.s32.totalorder 1, %s17
      %p73 = scmp.lt.s32.totalorder %s17, 3
      %p74 = pnand %p72, %p73
      %p75 = pneg %p74
      // Predicated region
      $region9: #{tpu_custom_call.1} parent=5 // pred_check
        _
      $region10: #{tpu_custom_call.1} parent=5 // pred_check_branch
        %77 = sbr.rel (%p74) target = $region12
      $region11: #{tpu_custom_call.1} parent=5 // pred_region
        %s78 = ssub.s32 %s17, 1
        // Predicated region
        $region13: #{tpu_custom_call.1} parent=11 // pred_check
          %p79 = pneg %p38
        $region14: #{tpu_custom_call.1} parent=11 // pred_check_branch
          %81 = sbr.rel (%p79) target = $region16
        $region15: #{tpu_custom_call.1} parent=11 // pred_region
          %s83 = ssub.s32 512, 512
          %84 = vsyncadd [#allocation7], %s83
          %s85 = sshll.u32 [#allocation6], 4
          %s86 = int_to_ptr.vmem [resolvable:$true] %s85
          %91 = dma.hbm_to_vmem [thread:$0]  %s1, 512, %s86, [#allocation7], 128, 128, 8
        $region16: #{tpu_custom_call.1} parent=11 // pred_fallthru
          _
      $region12: #{tpu_custom_call.1} parent=5 // pred_fallthru
        _
      %p92 = scmp.lt.s32.totalorder %s17, 2
      // Predicated region
      $region17: #{tpu_custom_call.1} parent=5 // pred_check
        %p93 = pneg %p92
      $region18: #{tpu_custom_call.1} parent=5 // pred_check_branch
        %95 = sbr.rel (%p93) target = $region20
      $region19: #{tpu_custom_call.1} parent=5 // pred_region
        _
      $region20: #{tpu_custom_call.1} parent=5 // pred_fallthru
        _
      %p96 = scmp.le.s32.totalorder 1, %s17
      %p97 = scmp.lt.s32.totalorder %s17, 3
      %p98 = pnand %p96, %p97
      %p99 = pneg %p98
      // Predicated region
      $region21: #{tpu_custom_call.1} parent=5 // pred_check
        _
      $region22: #{tpu_custom_call.1} parent=5 // pred_check_branch
        %101 = sbr.rel (%p98) target = $region24
      $region23: #{tpu_custom_call.1} parent=5 // pred_region
        %s102 = ssub.s32 %s17, 1
        // Predicated region
        $region25: #{tpu_custom_call.1} parent=23 // pred_check
          %p103 = pneg %p38
        $region26: #{tpu_custom_call.1} parent=23 // pred_check_branch
          %105 = sbr.rel (%p103) target = $region28
        $region27: #{tpu_custom_call.1} parent=23 // pred_region
          %106 = dma.done [#allocation7], 512
        $region28: #{tpu_custom_call.1} parent=23 // pred_fallthru
          _
        %p107 = pneg %p38
        %p108 = pneg %p35
        %p109 = pneg %p64
        %p110 = pneg %p61
        %s111 = sand.u32 %s51, 1
        %s112 = scalar_lea.sflag [#allocation8], %s111
        %s113 = sand.u32 %s51, 1
        %s114 = smul.addr %s113, 32
        %s115 = scalar_lea.vmem [#allocation9], %s114
        loop: start=0, step=1, limit=32
        $region29: #{tpu_custom_call.1} parent=23 // loop_pre_header
          _
        $region30: #{tpu_custom_call.1} parent=23 // loop_header
          %s117 = sphi 0, %s121
          %p118 = scmp.ge.s32.totalorder %s117, 32
        $region31: #{tpu_custom_call.1} parent=23 // loop_header_branch
          %120 = sbr.rel (%p118) target = $region35
        $region32: #{tpu_custom_call.1} parent=23 // loop_body
          %s122 = sshra.s32 %s117, 7
          %s123 = sand.u32 %s117, 127
          %s124 = sadd.s32 %s122, %s22
          %s125 = smul.u32 %s124, 128
          %s126 = sshra.s32 %s117, 7
          %s127 = sand.u32 %s117, 127
          %s128 = sadd.s32 %s125, %s127
          %s129 = sld [smem:[#allocation5 + %s128]]
          %p130 = scmp.gt.s32.totalorder %s129, 0
          %s131 = scalar_select %p130, %s129, 0
          %p132 = scmp.lt.s32.totalorder %s131, 16
          %s133 = scalar_select %p132, %s131, 16
          %s134 = smul.addr %s133, 16
          %s135 = scalar_lea.hbm %s2, %s134
          %s136 = scalar_lea.vmem [#allocation2], %s117
          %s137 = scalar_lea.sflag [#allocation3], %s117
          // Predicated region
          $region36: #{tpu_custom_call.1} parent=32 // pred_check
            _
          $region37: #{tpu_custom_call.1} parent=32 // pred_check_branch
            %139 = sbr.rel target = $region39
          $region38: #{tpu_custom_call.1} parent=32 // pred_region
            %140 = sst [smem:[#allocation12]] [#allocation11]
            %141 = sst [smem:[#allocation13]] [#allocation10]
          $region39: #{tpu_custom_call.1} parent=32 // pred_fallthru
            _
          %143 = shalt.err (0)
          %s145 = sshll.u32 %s136, 4
          %s146 = int_to_ptr.vmem [resolvable:$true] %s145
          %148 = dma.hbm_to_vmem [thread:$0]  %s135, 16, %s146, %s137
        $region33: #{tpu_custom_call.1} parent=23 // loop_footer
          %s121 = sadd.s32 1, %s117
        $region34: #{tpu_custom_call.1} parent=23 // loop_footer_branch
          %116 = sbr.rel target = $region30
        $region35: #{tpu_custom_call.1} parent=23 // loop_exit
          _
        loop: start=0, step=1, limit=32
        $region40: #{tpu_custom_call.1} parent=23 // loop_pre_header
          _
        $region41: #{tpu_custom_call.1} parent=23 // loop_header
          %s150 = sphi 0, %s154
          %p151 = scmp.ge.s32.totalorder %s150, 32
        $region42: #{tpu_custom_call.1} parent=23 // loop_header_branch
          %153 = sbr.rel (%p151) target = $region46
        $region43: #{tpu_custom_call.1} parent=23 // loop_body
          %s155 = scalar_lea.sflag [#allocation3], %s150
          %157 = dma.done %s155, 16
        $region44: #{tpu_custom_call.1} parent=23 // loop_footer
          %s154 = sadd.s32 1, %s150
        $region45: #{tpu_custom_call.1} parent=23 // loop_footer_branch
          %149 = sbr.rel target = $region41
        $region46: #{tpu_custom_call.1} parent=23 // loop_exit
          _
        %v158 = vld [vmem:[#allocation2] sm:$0xff]
        %v159 = vld [vmem:[#allocation2 + $0x8] sm:$0xff]
        %v160 = vld [vmem:[#allocation2 + $0x10] sm:$0xff]
        %v161 = vld [vmem:[#allocation2 + $0x18] sm:$0xff]
        %v162 = vld [vmem:[#allocation6] sm:$0xff]
        %v163 = vld [vmem:[#allocation6 + $0x8] sm:$0xff]
        %v164 = vld [vmem:[#allocation6 + $0x10] sm:$0xff]
        %v165 = vld [vmem:[#allocation6 + $0x18] sm:$0xff]
        %v166 = vadd.f32 %v158, %v162
        %v167 = vadd.f32 %v159, %v163
        %v168 = vadd.f32 %v160, %v164
        %v169 = vadd.f32 %v161, %v165
        %170 = vst [vmem:[%s115] sm:$0xff] %v166
        %171 = vst [vmem:[%s115 + $0x8] sm:$0xff] %v167
        %172 = vst [vmem:[%s115 + $0x10] sm:$0xff] %v168
        %173 = vst [vmem:[%s115 + $0x18] sm:$0xff] %v169
        %s174 = sand.u32 %s51, 1
        %s175 = scalar_lea.sflag [#allocation8], %s174
        %s176 = sand.u32 %s51, 1
        %s177 = smul.addr %s176, 32
        %s178 = scalar_lea.vmem [#allocation9], %s177
        // Predicated region
        $region47: #{tpu_custom_call.1} parent=23 // pred_check
          %p179 = pneg %p61
        $region48: #{tpu_custom_call.1} parent=23 // pred_check_branch
          %181 = sbr.rel (%p179) target = $region50
        $region49: #{tpu_custom_call.1} parent=23 // pred_region
          %s183 = ssub.s32 512, 512
          %184 = vsyncadd %s175, %s183
          %s185 = smul.addr %s22, 4
          %s186 = smul.addr %s185, 128
          %s187 = scalar_lea.hbm %s3, %s186
          %s188 = sshll.u32 %s178, 4
          %s189 = int_to_ptr.vmem [resolvable:$true] %s188
          %194 = dma.vmem_to_hbm [thread:$0]  %s189, 512, %s187, %s175, 128, 128, 8
        $region50: #{tpu_custom_call.1} parent=23 // pred_fallthru
          _
      $region24: #{tpu_custom_call.1} parent=5 // pred_fallthru
        _
      %p195 = scmp.le.s32.totalorder 2, %s17
      // Predicated region
      $region51: #{tpu_custom_call.1} parent=5 // pred_check
        %p196 = pneg %p195
      $region52: #{tpu_custom_call.1} parent=5 // pred_check_branch
        %198 = sbr.rel (%p196) target = $region54
      $region53: #{tpu_custom_call.1} parent=5 // pred_region
        %s199 = ssub.s32 %s17, 2
        // Predicated region
        $region55: #{tpu_custom_call.1} parent=53 // pred_check
          %p200 = pneg %p67
        $region56: #{tpu_custom_call.1} parent=53 // pred_check_branch
          %202 = sbr.rel (%p200) target = $region58
        $region57: #{tpu_custom_call.1} parent=53 // pred_region
          %s203 = sand.u32 %s52, 1
          %s204 = scalar_lea.sflag [#allocation8], %s203
          %s205 = sand.u32 %s52, 1
          %s206 = smul.addr %s205, 32
          %s207 = scalar_lea.vmem [#allocation9], %s206
          %208 = dma.done %s204, 512
        $region58: #{tpu_custom_call.1} parent=53 // pred_fallthru
          _
      $region54: #{tpu_custom_call.1} parent=5 // pred_fallthru
        _
    $region6: #{tpu_custom_call.1} parent=1 // loop_footer
      %s21 = sadd.s32 1, %s17
    $region7: #{tpu_custom_call.1} parent=1 // loop_footer_branch
      %16 = sbr.rel target = $region3
    $region8: #{tpu_custom_call.1} parent=1 // loop_exit
      _
    %209 = vsyncpa [#allocation7], 1
    %s210 = scalar_lea.sflag [#allocation7], 1
    %211 = vsyncpa %s210, 1
    %212 = vsyncpa [#allocation8], 1
    %s213 = scalar_lea.sflag [#allocation8], 1
    %214 = vsyncpa %s213, 1
  %215 = vsyncmov [#allocation3]
  %s216 = vpop.sfrf %215
  %p217 = scmp.eq.s32.totalorder %s216, 0
  %p218 = pneg %p217
  %220 = shalt.err (%p218)
  %s221 = scalar_lea.sflag [#allocation3], 1
  %222 = vsyncmov %s221
  %s223 = vpop.sfrf %222
  %p224 = scmp.eq.s32.totalorder %s223, 0
  %p225 = pneg %p224
  %227 = shalt.err (%p225)
  %s228 = scalar_lea.sflag [#allocation3], 2
  %229 = vsyncmov %s228
  %s230 = vpop.sfrf %229
  %p231 = scmp.eq.s32.totalorder %s230, 0
  %p232 = pneg %p231
  %234 = shalt.err (%p232)
  %s235 = scalar_lea.sflag [#allocation3], 3
  %236 = vsyncmov %s235
  %s237 = vpop.sfrf %236
  %p238 = scmp.eq.s32.totalorder %s237, 0
  %p239 = pneg %p238
  %241 = shalt.err (%p239)
  %s242 = scalar_lea.sflag [#allocation3], 4
  %243 = vsyncmov %s242
  %s244 = vpop.sfrf %243
  %p245 = scmp.eq.s32.totalorder %s244, 0
  %p246 = pneg %p245
  %248 = shalt.err (%p246)
  %s249 = scalar_lea.sflag [#allocation3], 5
  %250 = vsyncmov %s249
  %s251 = vpop.sfrf %250
  %p252 = scmp.eq.s32.totalorder %s251, 0
  %p253 = pneg %p252
  %255 = shalt.err (%p253)
  %s256 = scalar_lea.sflag [#allocation3], 6
  %257 = vsyncmov %s256
  %s258 = vpop.sfrf %257
  %p259 = scmp.eq.s32.totalorder %s258, 0
  %p260 = pneg %p259
  %262 = shalt.err (%p260)
  %s263 = scalar_lea.sflag [#allocation3], 7
  %264 = vsyncmov %s263
  %s265 = vpop.sfrf %264
  %p266 = scmp.eq.s32.totalorder %s265, 0
  %p267 = pneg %p266
  %269 = shalt.err (%p267)
  %s270 = scalar_lea.sflag [#allocation3], 8
  %271 = vsyncmov %s270
  %s272 = vpop.sfrf %271
  %p273 = scmp.eq.s32.totalorder %s272, 0
  %p274 = pneg %p273
  %276 = shalt.err (%p274)
  %s277 = scalar_lea.sflag [#allocation3], 9
  %278 = vsyncmov %s277
  %s279 = vpop.sfrf %278
  %p280 = scmp.eq.s32.totalorder %s279, 0
  %p281 = pneg %p280
  %283 = shalt.err (%p281)
  %s284 = scalar_lea.sflag [#allocation3], 10
  %285 = vsyncmov %s284
  %s286 = vpop.sfrf %285
  %p287 = scmp.eq.s32.totalorder %s286, 0
  %p288 = pneg %p287
  %290 = shalt.err (%p288)
  %s291 = scalar_lea.sflag [#allocation3], 11
  %292 = vsyncmov %s291
  %s293 = vpop.sfrf %292
  %p294 = scmp.eq.s32.totalorder %s293, 0
  %p295 = pneg %p294
  %297 = shalt.err (%p295)
  %s298 = scalar_lea.sflag [#allocation3], 12
  %299 = vsyncmov %s298
  %s300 = vpop.sfrf %299
  %p301 = scmp.eq.s32.totalorder %s300, 0
  %p302 = pneg %p301
  %304 = shalt.err (%p302)
  %s305 = scalar_lea.sflag [#allocation3], 13
  %306 = vsyncmov %s305
  %s307 = vpop.sfrf %306
  %p308 = scmp.eq.s32.totalorder %s307, 0
  %p309 = pneg %p308
  %311 = shalt.err (%p309)
  %s312 = scalar_lea.sflag [#allocation3], 14
  %313 = vsyncmov %s312
  %s314 = vpop.sfrf %313
  %p315 = scmp.eq.s32.totalorder %s314, 0
  %p316 = pneg %p315
  %318 = shalt.err (%p316)
  %s319 = scalar_lea.sflag [#allocation3], 15
  %320 = vsyncmov %s319
  %s321 = vpop.sfrf %320
  %p322 = scmp.eq.s32.totalorder %s321, 0
  %p323 = pneg %p322
  %325 = shalt.err (%p323)
  %s326 = scalar_lea.sflag [#allocation3], 16
  %327 = vsyncmov %s326
  %s328 = vpop.sfrf %327
  %p329 = scmp.eq.s32.totalorder %s328, 0
  %p330 = pneg %p329
  %332 = shalt.err (%p330)
  %s333 = scalar_lea.sflag [#allocation3], 17
  %334 = vsyncmov %s333
  %s335 = vpop.sfrf %334
  %p336 = scmp.eq.s32.totalorder %s335, 0
  %p337 = pneg %p336
  %339 = shalt.err (%p337)
  %s340 = scalar_lea.sflag [#allocation3], 18
  %341 = vsyncmov %s340
  %s342 = vpop.sfrf %341
  %p343 = scmp.eq.s32.totalorder %s342, 0
  %p344 = pneg %p343
  %346 = shalt.err (%p344)
  %s347 = scalar_lea.sflag [#allocation3], 19
  %348 = vsyncmov %s347
  %s349 = vpop.sfrf %348
  %p350 = scmp.eq.s32.totalorder %s349, 0
  %p351 = pneg %p350
  %353 = shalt.err (%p351)
  %s354 = scalar_lea.sflag [#allocation3], 20
  %355 = vsyncmov %s354
  %s356 = vpop.sfrf %355
  %p357 = scmp.eq.s32.totalorder %s356, 0
  %p358 = pneg %p357
  %360 = shalt.err (%p358)
  %s361 = scalar_lea.sflag [#allocation3], 21
  %362 = vsyncmov %s361
  %s363 = vpop.sfrf %362
  %p364 = scmp.eq.s32.totalorder %s363, 0
  %p365 = pneg %p364
  %367 = shalt.err (%p365)
  %s368 = scalar_lea.sflag [#allocation3], 22
  %369 = vsyncmov %s368
  %s370 = vpop.sfrf %369
  %p371 = scmp.eq.s32.totalorder %s370, 0
  %p372 = pneg %p371
  %374 = shalt.err (%p372)
  %s375 = scalar_lea.sflag [#allocation3], 23
  %376 = vsyncmov %s375
  %s377 = vpop.sfrf %376
  %p378 = scmp.eq.s32.totalorder %s377, 0
  %p379 = pneg %p378
  %381 = shalt.err (%p379)
  %s382 = scalar_lea.sflag [#allocation3], 24
  %383 = vsyncmov %s382
  %s384 = vpop.sfrf %383
  %p385 = scmp.eq.s32.totalorder %s384, 0
  %p386 = pneg %p385
  %388 = shalt.err (%p386)
  %s389 = scalar_lea.sflag [#allocation3], 25
  %390 = vsyncmov %s389
  %s391 = vpop.sfrf %390
  %p392 = scmp.eq.s32.totalorder %s391, 0
  %p393 = pneg %p392
  %395 = shalt.err (%p393)
  %s396 = scalar_lea.sflag [#allocation3], 26
  %397 = vsyncmov %s396
  %s398 = vpop.sfrf %397
  %p399 = scmp.eq.s32.totalorder %s398, 0
  %p400 = pneg %p399
  %402 = shalt.err (%p400)
  %s403 = scalar_lea.sflag [#allocation3], 27
  %404 = vsyncmov %s403
  %s405 = vpop.sfrf %404
  %p406 = scmp.eq.s32.totalorder %s405, 0
  %p407 = pneg %p406
  %409 = shalt.err (%p407)
  %s410 = scalar_lea.sflag [#allocation3], 28
  %411 = vsyncmov %s410
  %s412 = vpop.sfrf %411
  %p413 = scmp.eq.s32.totalorder %s412, 0
  %p414 = pneg %p413
  %416 = shalt.err (%p414)
  %s417 = scalar_lea.sflag [#allocation3], 29
  %418 = vsyncmov %s417
  %s419 = vpop.sfrf %418
  %p420 = scmp.eq.s32.totalorder %s419, 0
  %p421 = pneg %p420
  %423 = shalt.err (%p421)
  %s424 = scalar_lea.sflag [#allocation3], 30
  %425 = vsyncmov %s424
  %s426 = vpop.sfrf %425
  %p427 = scmp.eq.s32.totalorder %s426, 0
  %p428 = pneg %p427
  %430 = shalt.err (%p428)
  %s431 = scalar_lea.sflag [#allocation3], 31
  %432 = vsyncmov %s431
  %s433 = vpop.sfrf %432
  %p434 = scmp.eq.s32.totalorder %s433, 0
  %p435 = pneg %p434
  %437 = shalt.err (%p435)

</llo_original>
